<compile_context>
chip_gen: v7x
topology: tpu7x:2x2x1
jax: 0.10.0
libtpu: 0.0.40
codegen_flags: <defaults>
</compile_context>

<pallas_src>
from functools import partial

import jax
import jax.numpy as jnp
from jax.experimental import pallas as pl
from jax.experimental.pallas import tpu as pltpu


# ----------------------------------------------------------------------------
# Helpers
# ----------------------------------------------------------------------------
def _round_up(n, m):
    return ((n + m - 1) // m) * m


def _pad_last(a, target):
    pad = target - a.shape[-1]
    if pad == 0:
        return a
    widths = [(0, 0)] * (a.ndim - 1) + [(0, pad)]
    return jnp.pad(a, widths)


def _choose_tn(Hp):
    """Lane-dense H tile; prefer >= 2 tiles so v7x can split across its 2 TCs."""
    if Hp % 256 == 0 and Hp // 256 >= 2:
        return 256
    if Hp % 128 == 0 and Hp // 128 >= 2:
        return 128
    return Hp  # Hp is already a multiple of 128 (single tile)


# ----------------------------------------------------------------------------
# Fused Tent step kernel: linear fwd + softmax-entropy + grads + SGD update.
# Grid is (J,) over H tiles only; the batch is flattened into the matmul M.
# ----------------------------------------------------------------------------
def _tent_step_kernel(x_ref, w_ref, bias_ref, *out_refs,
                      lr, inv_bh, B, S, with_logits):
    if with_logits:
        logits_ref, new_w_ref, new_b_ref = out_refs
    else:
        new_w_ref, new_b_ref = out_refs
        logits_ref = None

    x = x_ref[...]                               # (B*S, D)  bf16 (pre-cast)
    w = w_ref[...]                               # (D, TN)   f32
    bias = bias_ref[...]                         # (1, TN)   f32
    w_mx = w.astype(jnp.bfloat16)                # cast once per H tile

    # ---- forward: logits for the whole batch, this H-tile ------------------
    logits = jnp.dot(x, w_mx, preferred_element_type=jnp.float32) + bias  # (B*S, TN)
    logits3 = logits.reshape(B, S, -1)           # (B, S, TN) f32

    if with_logits:
        logits_ref[...] = logits3                # only written on the last step

    # ---- softmax entropy over the sequence axis (axis 1) -------------------
    m = jnp.max(logits3, axis=1, keepdims=True)
    xm = logits3 - m
    e = jnp.exp(xm)
    z = jnp.sum(e, axis=1, keepdims=True)
    inv_z = pl.reciprocal(z, approx=True)        # EUP slot, frees VALU
    p = e * inv_z
    logp = xm - jnp.log(z)
    ent = -jnp.sum(p * logp, axis=1, keepdims=True)      # (B, 1, TN)

    # ---- entropy gradient: dLoss/dlogits, Loss = mean over (B, H_real) -----
    g3 = (-p * (logp + ent)) * inv_bh            # (B, S, TN) f32
    g_flat = g3.reshape(B * S, -1)               # (B*S, TN)  f32

    # ---- parameter grads: contract the flattened B*S axis directly ---------
    dw = jax.lax.dot_general(
        x, g_flat.astype(jnp.bfloat16),
        dimension_numbers=(((0,), (0,)), ((), ())),
        preferred_element_type=jnp.float32)      # (D, TN)
    db = jnp.sum(g_flat, axis=0, keepdims=True)  # (1, TN)

    # ---- in-kernel SGD update (aliased in place) ----------------------------
    new_w_ref[...] = w - lr * dw
    new_b_ref[...] = bias - lr * db


def _build_step_call(B, S, D, Hp, lr, h_real, with_logits):
    TN = _choose_tn(Hp)
    J = Hp // TN
    inv_bh = 1.0 / float(B * h_real)
    kernel = partial(_tent_step_kernel, lr=float(lr), inv_bh=inv_bh,
                     B=B, S=S, with_logits=with_logits)

    out_shape = (
        jax.ShapeDtypeStruct((D, Hp), jnp.float32),      # updated W
        jax.ShapeDtypeStruct((1, Hp), jnp.float32),      # updated b
    )
    out_specs = (
        pl.BlockSpec((D, TN), lambda j: (0, j)),         # new W
        pl.BlockSpec((1, TN), lambda j: (0, j)),         # new b
    )
    if with_logits:
        out_shape = (jax.ShapeDtypeStruct((B, S, Hp), jnp.float32),) + out_shape
        out_specs = (pl.BlockSpec((B, S, TN), lambda j: (0, 0, j)),) + out_specs
        aliases = {1: 1, 2: 2}                           # W, b updated in place
    else:
        aliases = {1: 0, 2: 1}

    return pl.pallas_call(
        kernel,
        out_shape=out_shape,
        grid=(J,),
        in_specs=[
            # x stays resident across the grid (constant block index), bf16.
            pl.BlockSpec((B * S, D), lambda j: (0, 0)),
            pl.BlockSpec((D, TN), lambda j: (0, j)),     # W tile
            pl.BlockSpec((1, TN), lambda j: (0, j)),     # b tile
        ],
        out_specs=out_specs,
        input_output_aliases=aliases,
        compiler_params=pltpu.CompilerParams(
            dimension_semantics=("parallel",),
            vmem_limit_bytes=48 * 1024 * 1024,           # headroom on v7x (64 MiB)
        ),
    )


@partial(jax.jit, static_argnames=("steps", "lr", "h_real"))
def _tent_adapt(x, w, b, *, steps, lr, h_real):
    """Run `steps` fused Tent steps inside one jit; returns (logits, W, b)."""
    B, S, D = x.shape
    Hp = w.shape[1]

    # Pre-cast x to bf16 once; it is the only tensor re-read on every step.
    x_flat = x.reshape(B * S, D).astype(jnp.bfloat16)

    update_call = _build_step_call(B, S, D, Hp, lr, h_real, with_logits=False)
    final_call = _build_step_call(B, S, D, Hp, lr, h_real, with_logits=True)

    def body(_, carry):
        w_c, b_c = carry
        return update_call(x_flat, w_c, b_c)

    if steps > 1:
        w, b = jax.lax.fori_loop(0, steps - 1, body, (w, b))

    # Last step: forward output (pre-update params) is what Tent returns.
    logits, new_w, new_b = final_call(x_flat, w, b)
    return logits[:, :, :h_real], new_w, new_b


# ----------------------------------------------------------------------------
# Standalone softmax_entropy kernel (spec parity / verification only;
# the adaptation hot path uses the fused kernel above).
# ----------------------------------------------------------------------------
def _softmax_entropy_kernel(x_ref, out_ref):
    x = x_ref[0].astype(jnp.float32)             # (S, H)
    m = jnp.max(x, axis=0, keepdims=True)
    xm = x - m
    e = jnp.exp(xm)
    z = jnp.sum(e, axis=0, keepdims=True)
    p = e / z
    logp = xm - jnp.log(z)
    out_ref[0] = -jnp.sum(p * logp, axis=0, keepdims=True)


def softmax_entropy(x):
    """Entropy of softmax distribution from logits (over axis 1). x: (B,S,H)."""
    B, S, H = x.shape
    ent = pl.pallas_call(
        _softmax_entropy_kernel,
        out_shape=jax.ShapeDtypeStruct((B, 1, H), jnp.float32),
        grid=(B,),
        in_specs=[pl.BlockSpec((1, S, H), lambda b: (b, 0, 0))],
        out_specs=pl.BlockSpec((1, 1, H), lambda b: (b, 0, 0)),
        compiler_params=pltpu.CompilerParams(dimension_semantics=("parallel",)),
    )(x)
    return ent[:, 0, :]                          # (B, H), matches torch .sum(1)


# ----------------------------------------------------------------------------
# Tent (entropy-minimization test-time adaptation)
# ----------------------------------------------------------------------------
class Tent:
    """Tent adapts a model by entropy minimization during testing."""

    def __init__(self, params, lr=1e-2, steps=1, episodic=False):
        assert steps > 0, "tent requires >= 1 step(s) to forward and update"
        w = jnp.asarray(params["w"], jnp.float32)                  # (D, H)
        b = jnp.asarray(params["b"], jnp.float32).reshape(1, -1)   # (1, H)
        self.h_real = int(w.shape[1])
        hp = _round_up(self.h_real, 128)                           # lane-dense pad
        self.params = {"w": _pad_last(w, hp), "b": _pad_last(b, hp)}
        self.lr = float(lr)
        self.steps = int(steps)
        self.episodic = episodic
        # copy_model_and_optimizer (SGD is stateless -> params only)
        self.model_state = {k: v for k, v in self.params.items()}

    def reset(self):
        # load_model_and_optimizer
        if self.model_state is None:
            raise Exception("cannot reset without saved model/optimizer state")
        self.params = {k: v for k, v in self.model_state.items()}

    def forward(self, x):
        if self.episodic:
            self.reset()
        x = jnp.asarray(x, jnp.float32)
        logits, new_w, new_b = _tent_adapt(
            x, self.params["w"], self.params["b"],
            steps=self.steps, lr=self.lr, h_real=self.h_real)
        self.params = {"w": new_w, "b": new_b}
        return logits                              # (B, S, H_real)

    __call__ = forward


# ----------------------------------------------------------------------------
# Pure-JAX reference (matches the kernel's bf16-MXU / f32-accum numerics)
# ----------------------------------------------------------------------------
def _ref_logits(x, w, b2d):
    return jnp.einsum("bsd,dh->bsh",
                      x.astype(jnp.bfloat16), w.astype(jnp.bfloat16),
                      preferred_element_type=jnp.float32) + b2d


def _ref_entropy(logits):
    p = jax.nn.softmax(logits, axis=1)
    logp = jax.nn.log_softmax(logits, axis=1)
    return -(p * logp).sum(axis=1)


def _ref_adapt(x, w, b2d, steps, lr, h_real):
    B = x.shape[0]

    def loss_fn(w_, b_):
        logits = _ref_logits(x, w_, b_)
        # padded columns have ~zero gradient; divide by the real count (B*H)
        return _ref_entropy(logits).sum() / (B * h_real)

    grad_fn = jax.grad(loss_fn, argnums=(0, 1))
    logits_last = None
    for _ in range(steps):
        logits_last = _ref_logits(x, w, b2d)
        gw, gb = grad_fn(w, b2d)
        w = w - lr * gw
        b2d = b2d - lr * gb
    return logits_last, w, b2d


# ----------------------------------------------------------------------------
# Example / correctness check
# ----------------------------------------------------------------------------
if __name__ == "__main__":
    B, S, D, H = 2, 8, 16, 32
    key = jax.random.PRNGKey(0)
    kx, kw, kb = jax.random.split(key, 3)

    x = jax.random.normal(kx, (B, S, D), dtype=jnp.float32)
    w = jax.random.normal(kw, (D, H), dtype=jnp.float32) * 0.1
    b = jax.random.normal(kb, (H,), dtype=jnp.float32) * 0.1
    lr = 1e-2

    # Padded reference params (mirrors Tent's internal lane-dense padding).
    hp = _round_up(H, 128)
    w_pad = jnp.zeros((D, hp), jnp.float32).at[:, :H].set(w)
    b_pad = jnp.zeros((1, hp), jnp.float32).at[:, :H].set(b)

    # ---- Check 1: standalone softmax_entropy kernel ------------------------
    logits0 = jnp.einsum("bsd,dh->bsh", x, w) + b
    ent_k = softmax_entropy(logits0)
    ent_ref = _ref_entropy(logits0)
    assert jnp.allclose(ent_k, ent_ref, atol=1e-4, rtol=1e-4), "entropy mismatch"

    # ---- Check 2: single fused Tent step ------------------------------------
    tent1 = Tent({"w": w, "b": b}, lr=lr, steps=1, episodic=False)
    out1 = tent1(x)
    jax.block_until_ready(out1)
    ref_logits1, ref_w1, ref_b1 = _ref_adapt(x, w_pad, b_pad, 1, lr, H)
    assert jnp.allclose(out1, ref_logits1[:, :, :H], atol=1e-3, rtol=1e-3), "logits mismatch"
    assert jnp.allclose(tent1.params["w"], ref_w1, atol=1e-4, rtol=1e-3), "W update mismatch"
    assert jnp.allclose(tent1.params["b"], ref_b1, atol=1e-4, rtol=1e-3), "b update mismatch"

    # ---- Check 3: multi-step adaptation (in-jit fori_loop + final fused step)
    tent3 = Tent({"w": w, "b": b}, lr=lr, steps=3)
    out3 = tent3(x)
    jax.block_until_ready(out3)
    ref_logits3, ref_w3, ref_b3 = _ref_adapt(x, w_pad, b_pad, 3, lr, H)
    assert jnp.allclose(out3, ref_logits3[:, :, :H], atol=1e-3, rtol=1e-3), "multi-step logits mismatch"
    assert jnp.allclose(tent3.params["w"], ref_w3, atol=1e-3, rtol=1e-3), "multi-step W mismatch"
    assert jnp.allclose(tent3.params["b"], ref_b3, atol=1e-3, rtol=1e-3), "multi-step b mismatch"

    # ---- Check 4: episodic reset --------------------------------------------
    tent_e = Tent({"w": w, "b": b}, lr=lr, steps=1, episodic=True)
    _ = tent_e(x)
    p_first = dict(tent_e.params)
    _ = tent_e(x)   # resets before adapting -> must land on the same params
    assert jnp.allclose(tent_e.params["w"], p_first["w"], atol=1e-6), "episodic reset mismatch"

    jax.block_until_ready(tent_e.params["w"])
    print("KERNEL_OK")
</pallas_src>

<mosaic_0001>
module attributes {stable_mosaic.version = 11 : i64} {
  func.func @_softmax_entropy_kernel(%arg0: i32, %arg1: memref<1x8x32xf32, #tpu.memory_space<vmem>>, %arg2: memref<1x1x32xf32, #tpu.memory_space<vmem>>) attributes {dimension_semantics = [#tpu.dimension_semantics<parallel>], iteration_bounds = array<i64: 2>, scalar_prefetch = 0 : i64, scratch_operands = 0 : i64, tpu.core_type = #tpu.core_type<tc>, window_params = [{transform_indices = @transform_0, window_bounds = array<i64: 1, 8, 32>}, {transform_indices = @transform_1, window_bounds = array<i64: 1, 1, 32>}]} {
    %c0 = arith.constant 0 : index
    %c0_0 = arith.constant 0 : index
    %c0_1 = arith.constant 0 : index
    %0 = vector.load %arg1[%c0, %c0_0, %c0_1] : memref<1x8x32xf32, #tpu.memory_space<vmem>>, vector<1x8x32xf32>
    %1 = vector.shape_cast %0 : vector<1x8x32xf32> to vector<8x32xf32>
    %cst = arith.constant dense<0xFF800000> : vector<32xf32>
    %2 = vector.multi_reduction <maximumf>, %1, %cst [0] : vector<8x32xf32> to vector<32xf32>
    %3 = vector.shape_cast %2 : vector<32xf32> to vector<1x32xf32>
    %4 = vector.broadcast %3 : vector<1x32xf32> to vector<8x32xf32>
    %5 = arith.subf %1, %4 : vector<8x32xf32>
    %6 = math.exp %5 : vector<8x32xf32>
    %cst_2 = arith.constant dense<0.000000e+00> : vector<32xf32>
    %7 = vector.multi_reduction <add>, %6, %cst_2 [0] : vector<8x32xf32> to vector<32xf32>
    %8 = vector.shape_cast %7 : vector<32xf32> to vector<1x32xf32>
    %9 = vector.broadcast %8 : vector<1x32xf32> to vector<8x32xf32>
    %10 = arith.divf %6, %9 : vector<8x32xf32>
    %11 = math.log %8 : vector<1x32xf32>
    %12 = vector.broadcast %11 : vector<1x32xf32> to vector<8x32xf32>
    %13 = arith.subf %5, %12 : vector<8x32xf32>
    %14 = arith.mulf %10, %13 : vector<8x32xf32>
    %cst_3 = arith.constant dense<0.000000e+00> : vector<32xf32>
    %15 = vector.multi_reduction <add>, %14, %cst_3 [0] : vector<8x32xf32> to vector<32xf32>
    %16 = vector.shape_cast %15 : vector<32xf32> to vector<1x32xf32>
    %cst_4 = arith.constant 0.000000e+00 : f32
    %17 = vector.broadcast %cst_4 : f32 to vector<1x32xf32>
    %18 = arith.subf %17, %16 : vector<1x32xf32>
    %c0_5 = arith.constant 0 : index
    %c0_6 = arith.constant 0 : index
    %c0_7 = arith.constant 0 : index
    %19 = vector.load %arg2[%c0_5, %c0_6, %c0_7] : memref<1x1x32xf32, #tpu.memory_space<vmem>>, vector<1x1x32xf32>
    %20 = vector.shape_cast %19 : vector<1x1x32xf32> to vector<1x32xf32>
    %21 = vector.shape_cast %18 : vector<1x32xf32> to vector<1x1x32xf32>
    tpu.vector_store %arg2[%c0_5, %c0_6, %c0_7], %21 {strides = array<i32>} : memref<1x1x32xf32, #tpu.memory_space<vmem>>, vector<1x1x32xf32>,
    return
  }
  func.func @transform_0(%arg0: i32) -> (i32, i32, i32) {
    %c0_i32 = arith.constant 0 : i32
    %c0_i32_0 = arith.constant 0 : i32
    %c0_i32_1 = arith.constant 0 : i32
    return %arg0, %c0_i32, %c0_i32_0 : i32, i32, i32
  }
  func.func @transform_1(%arg0: i32) -> (i32, i32, i32) {
    %c0_i32 = arith.constant 0 : i32
    %c0_i32_0 = arith.constant 0 : i32
    %c0_i32_1 = arith.constant 0 : i32
    return %arg0, %c0_i32, %c0_i32_0 : i32, i32, i32
  }
}

</mosaic_0001>

<llo_original>
// kernel: tpu_custom_call.1
$region0: #{tpu_custom_call.1}
  #allocation0 [shape = 'u32[]', space=smem, size = 0x4, offset = 0x4, fixed_abs, tag = 'smem constant byte address 0x4 - core index']
  #allocation1 [shape = 'u32[144,128]{1,0:T(1,128)}', space=vmem, size = 0x12000, scoped, tag = 'internal scratch']
  %s0 = inlined_call_operand.hbm [shape: f32[2,8,32], index: 0, kind: input, shape index: {}]
  %s1 = inlined_call_operand.hbm [shape: f32[2,1,32], index: 1, kind: output, shape index: {}]
  %s2 = sld [smem:[#allocation0]]
  $region41: #{tpu_custom_call.1} parent=0
    _
  %s4 = ssub.s32 1, %s2
  %s5 = scalar_select 0, %s4, %s2
  $region1: #{tpu_custom_call.1} parent=0
    #allocation2 [shape = 'u8[8192]{0}', space=vmem, size = 0x2000, scoped, tag = 'input window, operand 0']
    #allocation3 [shape = 's32[2]{0}', space=sflag, size = 0x8, scoped, tag = 'scoped memory for tpu_custom_call.1']
    #allocation4 [shape = 's32[2]{0}', space=sflag, size = 0x8, scoped, tag = 'scoped memory for tpu_custom_call.1']
    #allocation5 [shape = 'u8[1024]{0}', space=vmem, size = 0x400, scoped, tag = 'output window, operand 0']
    %6 = vsyncpa [#allocation3], 0
    %s7 = scalar_lea.sflag [#allocation3], 1
    %8 = vsyncpa %s7, 0
    %9 = vsyncpa [#allocation4], 0
    %s10 = scalar_lea.sflag [#allocation4], 1
    %11 = vsyncpa %s10, 0
    loop: start=0, step=1, limit=4
    $region2: #{tpu_custom_call.1} parent=1 // loop_pre_header
      _
    $region3: #{tpu_custom_call.1} parent=1 // loop_header
      %s13 = sphi 0, %s17
      %p14 = scmp.ge.s32.totalorder %s13, 4
      %s23 = sphi 0, %s25
      %s26 = sphi 0, %s23
      %s27 = sphi 0, %s26
      %s43 = sphi 0, %s27
      %s49 = sphi 0, %s51
      %s52 = sphi 0, %s49
      %s53 = sphi 0, %s52
      %s69 = sphi 0, %s53
    $region4: #{tpu_custom_call.1} parent=1 // loop_header_branch
      %16 = sbr.rel (%p14) target = $region8
    $region5: #{tpu_custom_call.1} parent=1 // loop_body
      %s18 = ssub.s32 %s13, 1
      %s19 = ssub.s32 %s13, 2
      %s20 = sadd.s32 %s13, 1
      %s21 = ssub.s32 %s13, %s20
      %p22 = scmp.eq.s32.totalorder %s21, 0
      %s24 = sadd.s32 %s23, 1
      %s25 = scalar_select %p22, %s23, %s24
      %p28 = pneg %p22
      %p29 = scmp.eq.s32.totalorder %s13, 1
      %p30 = por %p28, %p29
      %p31 = scmp.ne.s32.totalorder %s23, %s26
      %p32 = scmp.eq.s32.totalorder %s13, 0
      %p33 = por %p31, %p32
      %p34 = scmp.ne.s32.totalorder %s23, %s26
      %p35 = scmp.eq.s32.totalorder %s18, 1
      %p36 = por %p34, %p35
      %p37 = scmp.ne.s32.totalorder %s26, %s27
      %p38 = scmp.eq.s32.totalorder %s18, 0
      %p39 = por %p37, %p38
      %p40 = scmp.ne.s32.totalorder %s26, %s27
      %p41 = scmp.eq.s32.totalorder %s19, 1
      %p42 = por %p40, %p41
      %p44 = scmp.ne.s32.totalorder %s27, %s43
      %p45 = scmp.eq.s32.totalorder %s19, 0
      %p46 = por %p44, %p45
      %s47 = ssub.s32 %s13, %s20
      %p48 = scmp.eq.s32.totalorder %s47, 0
      %s50 = sadd.s32 %s49, 1
      %s51 = scalar_select %p48, %s49, %s50
      %p54 = pneg %p48
      %p55 = scmp.eq.s32.totalorder %s13, 1
      %p56 = por %p54, %p55
      %p57 = scmp.ne.s32.totalorder %s49, %s52
      %p58 = scmp.eq.s32.totalorder %s13, 0
      %p59 = por %p57, %p58
      %p60 = scmp.ne.s32.totalorder %s49, %s52
      %p61 = scmp.eq.s32.totalorder %s18, 1
      %p62 = por %p60, %p61
      %p63 = scmp.ne.s32.totalorder %s52, %s53
      %p64 = scmp.eq.s32.totalorder %s18, 0
      %p65 = por %p63, %p64
      %p66 = scmp.ne.s32.totalorder %s52, %s53
      %p67 = scmp.eq.s32.totalorder %s19, 1
      %p68 = por %p66, %p67
      %p70 = scmp.ne.s32.totalorder %s53, %s69
      %p71 = scmp.eq.s32.totalorder %s19, 0
      %p72 = por %p70, %p71
      %p73 = scmp.le.s32.totalorder 1, %s13
      %p74 = scmp.lt.s32.totalorder %s13, 3
      %p75 = pnand %p73, %p74
      %p76 = pneg %p75
      // Predicated region
      $region9: #{tpu_custom_call.1} parent=5 // pred_check
        _
      $region10: #{tpu_custom_call.1} parent=5 // pred_check_branch
        %78 = sbr.rel (%p75) target = $region12
      $region11: #{tpu_custom_call.1} parent=5 // pred_region
        %s79 = ssub.s32 %s13, 1
      $region12: #{tpu_custom_call.1} parent=5 // pred_fallthru
        _
      %p80 = scmp.lt.s32.totalorder %s13, 2
      // Predicated region
      $region13: #{tpu_custom_call.1} parent=5 // pred_check
        %p81 = pneg %p80
      $region14: #{tpu_custom_call.1} parent=5 // pred_check_branch
        %83 = sbr.rel (%p81) target = $region16
      $region15: #{tpu_custom_call.1} parent=5 // pred_region
        // Predicated region
        $region17: #{tpu_custom_call.1} parent=15 // pred_check
          %p84 = pneg %p33
        $region18: #{tpu_custom_call.1} parent=15 // pred_check_branch
          %86 = sbr.rel (%p84) target = $region20
        $region19: #{tpu_custom_call.1} parent=15 // pred_region
          %s87 = sand.u32 %s23, 1
          %s88 = scalar_lea.sflag [#allocation3], %s87
          %s89 = sand.u32 %s23, 1
          %s90 = smul.addr %s89, 8
          %s91 = scalar_lea.vmem [#allocation2], %s90
          %s93 = ssub.s32 128, 128
          %94 = vsyncadd %s88, %s93
          %s95 = smul.addr %s13, 128
          %s96 = scalar_lea.hbm %s0, %s95
          %s98 = sshll.u32 %s91, 4
          %s99 = int_to_ptr.vmem [resolvable:$true] %s98
          %101 = dma.hbm_to_vmem [thread:$0]  %s96, 128, %s99, %s88
        $region20: #{tpu_custom_call.1} parent=15 // pred_fallthru
          _
      $region16: #{tpu_custom_call.1} parent=5 // pred_fallthru
        _
      %p102 = scmp.le.s32.totalorder 1, %s13
      %p103 = scmp.lt.s32.totalorder %s13, 3
      %p104 = pnand %p102, %p103
      %p105 = pneg %p104
      // Predicated region
      $region21: #{tpu_custom_call.1} parent=5 // pred_check
        _
      $region22: #{tpu_custom_call.1} parent=5 // pred_check_branch
        %107 = sbr.rel (%p104) target = $region24
      $region23: #{tpu_custom_call.1} parent=5 // pred_region
        %s108 = ssub.s32 %s13, 1
        %s109 = sand.u32 %s26, 1
        %s110 = scalar_lea.sflag [#allocation3], %s109
        %s111 = sand.u32 %s26, 1
        %s112 = smul.addr %s111, 8
        %s113 = scalar_lea.vmem [#allocation2], %s112
        // Predicated region
        $region25: #{tpu_custom_call.1} parent=23 // pred_check
          %p114 = pneg %p39
        $region26: #{tpu_custom_call.1} parent=23 // pred_check_branch
          %116 = sbr.rel (%p114) target = $region28
        $region27: #{tpu_custom_call.1} parent=23 // pred_region
          %117 = dma.done %s110, 128
        $region28: #{tpu_custom_call.1} parent=23 // pred_fallthru
          _
        %s118 = sand.u32 %s26, 1
        %s119 = scalar_lea.sflag [#allocation3], %s118
        %s120 = sand.u32 %s26, 1
        %s121 = smul.addr %s120, 8
        %s122 = scalar_lea.vmem [#allocation2], %s121
        %p123 = pneg %p39
        %p124 = pneg %p36
        %p125 = pneg %p65
        %p126 = pneg %p62
        %s127 = sand.u32 %s52, 1
        %s128 = scalar_lea.sflag [#allocation4], %s127
        %s129 = sand.u32 %s52, 1
        %s130 = scalar_lea.vmem [#allocation5], %s129
        %v131 = vld [vmem:[%s113] sm:$0xff]
        %vm132 = vcmask 261120
        %v133 = vsel %vm132, %v131, -inf
        %v134 = vrot.slane %v133, 4
        %v135 = vmax.f32 %v133, %v134
        %v136 = vrot.slane %v135, 2
        %v137 = vmax.f32 %v135, %v136
        %v138 = vrot.slane %v137, 1
        %v139 = vmax.f32 %v137, %v138
        %v140 = vsub.f32 %v131, %v139
        %v141 = vmul.f32 %v140, 1.442695
        %v142 = vpow.pop %v141
        %v143 = vsel %vm132, %v142, 0.0
        %v144 = vrot.slane %v143, 4
        %v145 = vadd.f32 %v143, %v144
        %v146 = vrot.slane %v145, 2
        %v147 = vadd.f32 %v145, %v146
        %v148 = vrot.slane %v147, 1
        %v149 = vadd.f32 %v147, %v148
        %v150 = vrcp.pop %v149
        %v151 = vmul.f32 %v142, %v150
        %v152 = vlog2.pop %v149
        %v153 = vmul.f32 %v152, 0.6931472
        %v154 = vsub.f32 %v140, %v153
        %v155 = vmul.f32 %v151, %v154
        %v156 = vsel %vm132, %v155, 0.0
        %v157 = vrot.slane %v156, 4
        %v158 = vadd.f32 %v156, %v157
        %v159 = vrot.slane %v158, 2
        %v160 = vadd.f32 %v158, %v159
        %v161 = vrot.slane %v160, 1
        %v162 = vadd.f32 %v160, %v161
        %v163 = vsub.f32 0.0, %v162
        %vm164 = vcmask 253952
        %165 = vst.msk [vmem:[%s130] sm:$0x1] %vm164, %v163
        %s166 = sand.u32 %s52, 1
        %s167 = scalar_lea.sflag [#allocation4], %s166
        %s168 = sand.u32 %s52, 1
        %s169 = scalar_lea.vmem [#allocation5], %s168
        // Predicated region
        $region29: #{tpu_custom_call.1} parent=23 // pred_check
          %p170 = pneg %p62
        $region30: #{tpu_custom_call.1} parent=23 // pred_check_branch
          %172 = sbr.rel (%p170) target = $region32
        $region31: #{tpu_custom_call.1} parent=23 // pred_region
          %s174 = ssub.s32 16, 16
          %175 = vsyncadd %s167, %s174
          %s176 = smul.addr %s18, 16
          %s177 = scalar_lea.hbm %s1, %s176
          %s179 = sshll.u32 %s169, 4
          %s180 = int_to_ptr.vmem [resolvable:$true] %s179
          %182 = dma.vmem_to_hbm [thread:$0]  %s180, 16, %s177, %s167
        $region32: #{tpu_custom_call.1} parent=23 // pred_fallthru
          _
      $region24: #{tpu_custom_call.1} parent=5 // pred_fallthru
        _
      %p183 = scmp.le.s32.totalorder 2, %s13
      // Predicated region
      $region33: #{tpu_custom_call.1} parent=5 // pred_check
        %p184 = pneg %p183
      $region34: #{tpu_custom_call.1} parent=5 // pred_check_branch
        %186 = sbr.rel (%p184) target = $region36
      $region35: #{tpu_custom_call.1} parent=5 // pred_region
        %s187 = ssub.s32 %s13, 2
        // Predicated region
        $region37: #{tpu_custom_call.1} parent=35 // pred_check
          %p188 = pneg %p68
        $region38: #{tpu_custom_call.1} parent=35 // pred_check_branch
          %190 = sbr.rel (%p188) target = $region40
        $region39: #{tpu_custom_call.1} parent=35 // pred_region
          %s191 = sand.u32 %s53, 1
          %s192 = scalar_lea.sflag [#allocation4], %s191
          %s193 = sand.u32 %s53, 1
          %s194 = scalar_lea.vmem [#allocation5], %s193
          %195 = dma.done %s192, 16
        $region40: #{tpu_custom_call.1} parent=35 // pred_fallthru
          _
      $region36: #{tpu_custom_call.1} parent=5 // pred_fallthru
        _
    $region6: #{tpu_custom_call.1} parent=1 // loop_footer
      %s17 = sadd.s32 1, %s13
    $region7: #{tpu_custom_call.1} parent=1 // loop_footer_branch
      %12 = sbr.rel target = $region3
    $region8: #{tpu_custom_call.1} parent=1 // loop_exit
      _
    %196 = vsyncpa [#allocation3], 1
    %s197 = scalar_lea.sflag [#allocation3], 1
    %198 = vsyncpa %s197, 1
    %199 = vsyncpa [#allocation4], 1
    %s200 = scalar_lea.sflag [#allocation4], 1
    %201 = vsyncpa %s200, 1

</llo_original>
